<compile_context>
chip_gen: v5e
topology: v5e:2x2
jax: 0.10.0
libtpu: 0.0.40
codegen_flags: <defaults>
</compile_context>

<pallas_src>
import math
import functools

import jax
import jax.numpy as jnp
from jax.experimental import pallas as pl
from jax.experimental.pallas import tpu as pltpu


_PAD_COORD = 1e9  # far-away sentinel: exp underflows to exactly 0 on padded lanes


def _round_up(x, m):
    return ((x + m - 1) // m) * m


def _cdiv(a, b):
    return (a + b - 1) // b


def _radial_basis_kernel(scale_ref, coords_ref, gridc_ref, out_ref):
    """One full batch tile of the radial-basis forward.

    scale_ref  : SMEM (1,)            f32  -0.5 / std^2
    coords_ref : VMEM (TB, D)         f32  centroid coordinates for this batch tile
    gridc_ref  : VMEM (D, SIZE_PAD)   f32  grid coordinates (constant across tiles)
    out_ref    : VMEM (TB, SIZE_PAD)       normalized Gaussian bump per batch row
    """
    scale = scale_ref[0]

    # Squared distance. D is static (1 or 2) -> unrolled broadcast-subtract-square on the VPU.
    diff = gridc_ref[0:1, :] - coords_ref[:, 0:1]               # (TB, SIZE_PAD)
    d2 = diff * diff
    for d in range(1, coords_ref.shape[1]):
        diff = gridc_ref[d:d + 1, :] - coords_ref[:, d:d + 1]
        d2 = d2 + diff * diff

    w = jnp.exp(d2 * scale)                                     # EUP exp, f32

    # Note: if a centroid is so far from every grid point (relative to std) that all terms
    # underflow, the row becomes 0/0 -> NaN, exactly matching the PyTorch reference.
    if out_ref.dtype == jnp.float32:
        # Fold the Gaussian into the output buffer, reduce from it and normalize in place:
        # no separate (TB, SIZE_PAD) temp stays live across the XLU reduce.
        out_ref[...] = w
        denom = jnp.sum(out_ref[...], axis=-1, keepdims=True)   # (TB, 1)
        out_ref[...] = out_ref[...] * (1.0 / denom)             # exact tiny reciprocal + 1 mul
    else:
        # Lower-precision output: keep exp/sum/normalize in f32, cast only at the final store.
        denom = jnp.sum(w, axis=-1, keepdims=True)
        out_ref[...] = (w * (1.0 / denom)).astype(out_ref.dtype)


@functools.partial(jax.jit, static_argnames=("tile_b", "out_dtype"))
def _radial_basis_pallas(scale, coords, grid_xy, *, tile_b, out_dtype):
    B, D = coords.shape            # B is pre-padded to a multiple of tile_b
    _, SIZE = grid_xy.shape
    n_tiles = B // tile_b

    # Explicit VMEM accounting (feedback): double-buffered output tile dominates; the constant
    # grid block and tiny coords block are also double-buffered by the pipeline.
    out_bytes = 2 * tile_b * SIZE * jnp.dtype(out_dtype).itemsize
    grid_bytes = 2 * _round_up(D, 8) * SIZE * 4
    coord_bytes = 2 * _round_up(tile_b, 8) * 128 * 4
    footprint = out_bytes + grid_bytes + coord_bytes
    vmem_limit = int(min(64 * 1024 * 1024,
                         max(footprint + footprint // 2 + (2 << 20), 16 * 1024 * 1024)))

    return pl.pallas_call(
        _radial_basis_kernel,
        out_shape=jax.ShapeDtypeStruct((B, SIZE), out_dtype),
        grid=(n_tiles,),
        in_specs=[
            # fused Gaussian scale, scalar in SMEM
            pl.BlockSpec(memory_space=pltpu.MemorySpace.SMEM),
            # per-tile centroid coordinates (tiny)
            pl.BlockSpec((tile_b, D), lambda i: (i, 0)),
            # constant grid coordinates: same block every step (pipeline skips the re-copy)
            pl.BlockSpec((D, SIZE), lambda i: (0, 0)),
        ],
        out_specs=pl.BlockSpec((tile_b, SIZE), lambda i: (i, 0)),
        compiler_params=pltpu.CompilerParams(
            # batch tiles are independent -> 2-TC sharding on v7x; no-op (but free) on v5e/v6e
            dimension_semantics=("parallel",),
            vmem_limit_bytes=vmem_limit,
        ),
    )(scale, coords, grid_xy)


class RadialBasisPallas:
    """JAX/Pallas port of the PyTorch RadialBasis module (forward pass)."""

    def __init__(self, size, dims, *, out_dtype=jnp.float32,
                 vmem_budget_bytes=12 * 1024 * 1024, max_tile_b=None):
        # vmem_budget_bytes budgets the double-buffered output tile (the dominant term) and is
        # chosen to fit every generation's scoped-VMEM default (16 MiB v5e / 32 MiB v6e / v7x)
        # together with the grid + coords blocks; the exact footprint is still reported to the
        # compiler via vmem_limit_bytes.
        self.dims = dims
        self.size = size
        self.out_dtype = out_dtype
        self.vmem_budget_bytes = vmem_budget_bytes
        self.max_tile_b = max_tile_b

        if dims == 1:
            self.side = size
            coords = jnp.arange(size, dtype=jnp.float32)[None, :]            # (1, size)
        elif dims == 2:
            self.side = int(math.sqrt(size))
            if self.side ** 2 != size:
                raise ValueError("Dimensions must be equal")
            t = jnp.arange(self.side, dtype=jnp.float32)
            rr, cc = jnp.meshgrid(t, t, indexing="ij")
            coords = jnp.stack([rr.reshape(-1), cc.reshape(-1)], axis=0)      # (2, size)
        else:
            raise ValueError("Dimensionality of the output must be 1D or 2D.")

        # Pad the lane axis to a multiple of 128 so output stores are lane-dense (unmasked vst).
        # Padded columns use a far-away coordinate -> exact 0, does not perturb the row sum.
        self.size_padded = _round_up(size, 128)
        pad = self.size_padded - size
        if pad:
            coords = jnp.pad(coords, ((0, 0), (0, pad)), constant_values=_PAD_COORD)
        self.grid_xy = coords                                                 # (D, size_padded)

    def _pick_tile_b(self, B):
        # Rows affordable under the output double-buffer budget (multiple of 8 = f32 sublane).
        row_bytes = self.size_padded * jnp.dtype(self.out_dtype).itemsize
        rows_budget = self.vmem_budget_bytes // (2 * row_bytes)
        rows_budget = max(8, (rows_budget // 8) * 8)
        # Cap so the batch grid has >= ~4 steps once B is large enough: pipelines the HBM
        # writeback (v5e/v6e are writeback-bound) and gives both v7x TCs an even share.
        rows_for_steps = max(8, _round_up(_cdiv(B, 4), 8))
        tile = min(rows_budget, rows_for_steps)
        if self.max_tile_b is not None:
            tile = min(tile, max(8, _round_up(self.max_tile_b, 8)))
        tile = min(tile, _round_up(B, 8))
        return max(8, tile)

    def __call__(self, index, std, as_point=False):
        # --- glue: turn the flat index into centroid coordinates (plain JAX) ---
        if self.dims == 1:
            coords = jnp.asarray(index, jnp.float32).reshape(-1)[:, None]     # (B, 1)
        else:
            if as_point:
                coords = jnp.asarray(index, jnp.float32).reshape(-1, 2)       # (B, 2)
            else:
                idx = jnp.asarray(index)
                row = (idx // self.side).astype(jnp.float32)
                col = (idx % self.side).astype(jnp.float32)
                coords = jnp.stack([row, col], axis=1)                        # (B, 2)

        std_f = jnp.asarray(std, jnp.float32)
        scale = (-0.5 / (std_f * std_f)).reshape((1,)).astype(jnp.float32)

        B = coords.shape[0]
        tile_b = self._pick_tile_b(B)
        B_pad = _round_up(B, tile_b)
        if B_pad != B:
            # Zero-centroid padding: every batch block is full (valid math, no garbage/NaN rows);
            # padded rows are sliced away below.
            coords = jnp.pad(coords, ((0, B_pad - B), (0, 0)))

        out = _radial_basis_pallas(scale, coords, self.grid_xy,
                                   tile_b=tile_b, out_dtype=self.out_dtype)
        return out[:B, : self.size]


def _reference(index, std, size, dims, as_point=False):
    """Pure-JAX reference mirroring the torch forward exactly."""
    if dims == 1:
        grid = jnp.arange(size, dtype=jnp.float32)[None, :]                   # (1, SIZE)
        x = jnp.asarray(index, jnp.float32)[:, None]                          # (B, 1)
        dists = grid - x                                                      # (B, SIZE)
    else:
        side = int(math.sqrt(size))
        t = jnp.arange(side, dtype=jnp.float32)
        rr, cc = jnp.meshgrid(t, t, indexing="ij")
        grid = jnp.stack([rr.reshape(-1), cc.reshape(-1)], axis=1)[None]      # (1, SIZE, 2)
        if as_point:
            x = jnp.asarray(index, jnp.float32)[:, None, :]
        else:
            idx = jnp.asarray(index)
            row = (idx // side).astype(jnp.float32)
            col = (idx % side).astype(jnp.float32)
            x = jnp.stack([row, col], axis=1)[:, None, :]                     # (B, 1, 2)
        dists = jnp.linalg.norm(grid - x, axis=-1)                            # (B, SIZE)
    out = jnp.exp(-0.5 * (std ** -2.0) * dists ** 2)
    return out / jnp.sum(out, axis=-1, keepdims=True)


if __name__ == "__main__":
    std = 2.5
    tol = dict(atol=1e-6, rtol=1e-3)   # normalization is exact now -> tight tolerance
    key = jax.random.PRNGKey(0)
    k1, k2, k3, k4, k5 = jax.random.split(key, 5)

    # --- 2D case: size = 256 (16x16 grid), batch = 8, single tile ---
    size2, dims2, B = 256, 2, 8
    rb2 = RadialBasisPallas(size2, dims2)
    idx2 = jax.random.randint(k1, (B,), 0, size2, dtype=jnp.int32)
    out2 = jax.block_until_ready(rb2(idx2, std))
    ref2 = _reference(idx2, std, size2, dims2)
    assert out2.shape == (B, size2)
    assert jnp.allclose(out2, ref2, **tol)

    # --- 2D case, as_point=True ---
    pts = jax.random.randint(k2, (B, 2), 0, 16, dtype=jnp.int32)
    out2p = jax.block_until_ready(rb2(pts, std, as_point=True))
    ref2p = _reference(pts, std, size2, dims2, as_point=True)
    assert jnp.allclose(out2p, ref2p, **tol)

    # --- 1D case: size = 128, batch = 8 ---
    size1 = 128
    rb1 = RadialBasisPallas(size1, 1)
    idx1 = jax.random.randint(k3, (B,), 0, size1, dtype=jnp.int32)
    out1 = jax.block_until_ready(rb1(idx1, std))
    ref1 = _reference(idx1, std, size1, 1)
    assert out1.shape == (B, size1)
    assert jnp.allclose(out1, ref1, **tol)

    # --- 1D case, size not a multiple of 128 (exercise lane padding + slice-back) ---
    size1b = 100
    rb1b = RadialBasisPallas(size1b, 1)
    idx1b = jax.random.randint(k4, (B,), 0, size1b, dtype=jnp.int32)
    out1b = jax.block_until_ready(rb1b(idx1b, std))
    ref1b = _reference(idx1b, std, size1b, 1)
    assert out1b.shape == (B, size1b)
    assert jnp.allclose(out1b, ref1b, **tol)

    # --- multi-tile batch: B = 20, forced tile_b = 8 -> batch padded to 24, grid=(3,) ---
    Bm = 20
    rbm = RadialBasisPallas(size2, dims2, max_tile_b=8)
    idxm = jax.random.randint(k5, (Bm,), 0, size2, dtype=jnp.int32)
    outm = jax.block_until_ready(rbm(idxm, std))
    refm = _reference(idxm, std, size2, dims2)
    assert outm.shape == (Bm, size2)
    assert jnp.allclose(outm, refm, **tol)

    # --- larger batch: B = 64 -> >= 4 pipelined grid steps picked automatically ---
    Bl = 64
    idxl = jax.random.randint(jax.random.fold_in(key, 7), (Bl,), 0, size2, dtype=jnp.int32)
    outl = jax.block_until_ready(rb2(idxl, std))
    refl = _reference(idxl, std, size2, dims2)
    assert outl.shape == (Bl, size2)
    assert jnp.allclose(outl, refl, **tol)

    # --- optional bf16 output path (writeback-bound v5e/v6e win); compute stays f32 ---
    rb2_bf16 = RadialBasisPallas(size2, dims2, out_dtype=jnp.bfloat16)
    out_bf = jax.block_until_ready(rb2_bf16(idx2, std))
    assert out_bf.dtype == jnp.bfloat16
    assert jnp.allclose(out_bf.astype(jnp.float32), ref2, atol=1e-3, rtol=2e-2)

    print("KERNEL_OK")
</pallas_src>

<mosaic_0001>
module attributes {stable_mosaic.version = 11 : i64} {
  func.func @_radial_basis_kernel(%arg0: i32, %arg1: memref<1xf32, #tpu.memory_space<smem>>, %arg2: memref<8x2xf32, #tpu.memory_space<vmem>>, %arg3: memref<2x256xf32, #tpu.memory_space<vmem>>, %arg4: memref<8x256xf32, #tpu.memory_space<vmem>>) attributes {dimension_semantics = [#tpu.dimension_semantics<parallel>], iteration_bounds = array<i64: 1>, scalar_prefetch = 0 : i64, scratch_operands = 0 : i64, tpu.core_type = #tpu.core_type<tc>, window_params = [{transform_indices = @transform_0, window_bounds = array<i64: 1>}, {transform_indices = @transform_1, window_bounds = array<i64: 8, 2>}, {pipeline_mode = #tpu.pipeline_mode<synchronous>, transform_indices = @transform_2, window_bounds = array<i64: 2, 256>}, {transform_indices = @transform_3, window_bounds = array<i64: 8, 256>}]} {
    %c0 = arith.constant 0 : index
    %0 = memref.load %arg1[%c0] : memref<1xf32, #tpu.memory_space<smem>>
    %c0_0 = arith.constant 0 : index
    %c0_1 = arith.constant 0 : index
    %1 = vector.load %arg3[%c0_0, %c0_1] : memref<2x256xf32, #tpu.memory_space<vmem>>, vector<1x256xf32>
    %c0_2 = arith.constant 0 : index
    %c0_3 = arith.constant 0 : index
    %2 = vector.load %arg2[%c0_2, %c0_3] : memref<8x2xf32, #tpu.memory_space<vmem>>, vector<8x1xf32>
    %3 = vector.broadcast %1 : vector<1x256xf32> to vector<8x256xf32>
    %4 = vector.broadcast %2 : vector<8x1xf32> to vector<8x256xf32>
    %5 = arith.subf %3, %4 : vector<8x256xf32>
    %6 = arith.mulf %5, %5 : vector<8x256xf32>
    %c1 = arith.constant 1 : index
    %c0_4 = arith.constant 0 : index
    %7 = vector.load %arg3[%c1, %c0_4] : memref<2x256xf32, #tpu.memory_space<vmem>>, vector<1x256xf32>
    %c0_5 = arith.constant 0 : index
    %c1_6 = arith.constant 1 : index
    %8 = vector.load %arg2[%c0_5, %c1_6] : memref<8x2xf32, #tpu.memory_space<vmem>>, vector<8x1xf32>
    %9 = vector.broadcast %7 : vector<1x256xf32> to vector<8x256xf32>
    %10 = vector.broadcast %8 : vector<8x1xf32> to vector<8x256xf32>
    %11 = arith.subf %9, %10 : vector<8x256xf32>
    %12 = arith.mulf %11, %11 : vector<8x256xf32>
    %13 = arith.addf %6, %12 : vector<8x256xf32>
    %14 = vector.broadcast %0 : f32 to vector<8x256xf32>
    %15 = arith.mulf %13, %14 : vector<8x256xf32>
    %16 = math.exp %15 : vector<8x256xf32>
    %c0_7 = arith.constant 0 : index
    %c0_8 = arith.constant 0 : index
    %17 = vector.load %arg4[%c0_7, %c0_8] : memref<8x256xf32, #tpu.memory_space<vmem>>, vector<8x256xf32>
    tpu.vector_store %arg4[%c0_7, %c0_8], %16 {strides = array<i32>} : memref<8x256xf32, #tpu.memory_space<vmem>>, vector<8x256xf32>,
    %c0_9 = arith.constant 0 : index
    %c0_10 = arith.constant 0 : index
    %18 = vector.load %arg4[%c0_9, %c0_10] : memref<8x256xf32, #tpu.memory_space<vmem>>, vector<8x256xf32>
    %cst = arith.constant dense<0.000000e+00> : vector<8xf32>
    %19 = vector.multi_reduction <add>, %18, %cst [1] : vector<8x256xf32> to vector<8xf32>
    %20 = vector.shape_cast %19 : vector<8xf32> to vector<8x1xf32>
    %c0_11 = arith.constant 0 : index
    %c0_12 = arith.constant 0 : index
    %21 = vector.load %arg4[%c0_11, %c0_12] : memref<8x256xf32, #tpu.memory_space<vmem>>, vector<8x256xf32>
    %cst_13 = arith.constant 1.000000e+00 : f32
    %22 = vector.broadcast %cst_13 : f32 to vector<8x1xf32>
    %23 = arith.divf %22, %20 : vector<8x1xf32>
    %24 = vector.broadcast %23 : vector<8x1xf32> to vector<8x256xf32>
    %25 = arith.mulf %21, %24 : vector<8x256xf32>
    %c0_14 = arith.constant 0 : index
    %c0_15 = arith.constant 0 : index
    %26 = vector.load %arg4[%c0_14, %c0_15] : memref<8x256xf32, #tpu.memory_space<vmem>>, vector<8x256xf32>
    tpu.vector_store %arg4[%c0_14, %c0_15], %25 {strides = array<i32>} : memref<8x256xf32, #tpu.memory_space<vmem>>, vector<8x256xf32>,
    return
  }
  func.func @transform_0(%arg0: i32) -> i32 {
    %c0_i32 = arith.constant 0 : i32
    %c0_i32_0 = arith.constant 0 : i32
    return %c0_i32 : i32
  }
  func.func @transform_1(%arg0: i32) -> (i32, i32) {
    %c0_i32 = arith.constant 0 : i32
    %c0_i32_0 = arith.constant 0 : i32
    return %arg0, %c0_i32 : i32, i32
  }
  func.func @transform_2(%arg0: i32) -> (i32, i32) {
    %c0_i32 = arith.constant 0 : i32
    %c0_i32_0 = arith.constant 0 : i32
    %c0_i32_1 = arith.constant 0 : i32
    return %c0_i32, %c0_i32_0 : i32, i32
  }
  func.func @transform_3(%arg0: i32) -> (i32, i32) {
    %c0_i32 = arith.constant 0 : i32
    %c0_i32_0 = arith.constant 0 : i32
    return %arg0, %c0_i32 : i32, i32
  }
}

</mosaic_0001>

<llo_original>
// kernel: _radial_basis_pallas.1
$region0: #{_radial_basis_pallas.1}
  #allocation0 [shape = 'u32[]', space=smem, size = 0x4, offset = 0x4, fixed_abs, tag = 'smem constant byte address 0x4 - core index']
  #allocation1 [shape = 'u32[72,128]{1,0:T(1,128)}', space=vmem, size = 0x9000, scoped, tag = 'internal scratch']
  #allocation2 [shape = 'f32[1]{0:T(128)S(6)}', space=smem, size = 0x200, scoped, tag = 'scoped memory for _radial_basis_pallas.1']
  %s0 = inlined_call_operand.<no memory space> [shape: f32[1], index: 0, kind: input, shape index: {}]
  %s1 = inlined_call_operand.vmem [shape: f32[8,2], index: 1, kind: input, shape index: {}]
  %s2 = inlined_call_operand.vmem [shape: f32[2,256], index: 2, kind: input, shape index: {}]
  %s3 = inlined_call_operand.hbm [shape: f32[8,256], index: 3, kind: output, shape index: {}]
  %s4 = sld [smem:[#allocation0]]
  $region22: #{_radial_basis_pallas.1} parent=0
    _
  %s6 = ssub.s32 1, %s4
  %s7 = scalar_select 0, %s6, %s4
  %8 = sst [smem:[#allocation2]] %s0
  $region1: #{_radial_basis_pallas.1} parent=0
    #allocation3 [shape = 'u8[8192]{0}', space=vmem, size = 0x2000, scoped, tag = 'output window, operand 0, single buffered']
    #allocation4 [shape = 's32[1]{0}', space=sflag, size = 0x4, scoped, tag = 'scoped memory for _radial_basis_pallas.1']
    %9 = vsyncpa [#allocation4], 0
    // Predicated region
    $region2: #{_radial_basis_pallas.1} parent=1 // pred_check
      _
    $region3: #{_radial_basis_pallas.1} parent=1 // pred_check_branch
      %11 = sbr.rel (0) target = $region5
    $region4: #{_radial_basis_pallas.1} parent=1 // pred_region
      _
    $region5: #{_radial_basis_pallas.1} parent=1 // pred_fallthru
      _
    // Predicated region
    $region6: #{_radial_basis_pallas.1} parent=1 // pred_check
      _
    $region7: #{_radial_basis_pallas.1} parent=1 // pred_check_branch
      %13 = sbr.rel (0) target = $region9
    $region8: #{_radial_basis_pallas.1} parent=1 // pred_region
      _
    $region9: #{_radial_basis_pallas.1} parent=1 // pred_fallthru
      _
    // Predicated region
    $region10: #{_radial_basis_pallas.1} parent=1 // pred_check
      _
    $region11: #{_radial_basis_pallas.1} parent=1 // pred_check_branch
      %15 = sbr.rel (0) target = $region13
    $region12: #{_radial_basis_pallas.1} parent=1 // pred_region
      _
    $region13: #{_radial_basis_pallas.1} parent=1 // pred_fallthru
      _
    %s16 = sld [smem:[#allocation2]]
    %v17 = vld [vmem:[%s2] ss:$2 sm:$0x3]
    %v18 = vld [vmem:[%s1] sm:$0xff]
    %v20 = vperm.slane %v17, 0
    %v21 = vperm.slane %v17, 1
    %25 = vset.pattern.permute.xlu0 0
    %26 = vperm.xlu0 %25, %v18
    %v27 = vpop.permute.xlu0 %26
    %v29 = vsub.f32 %v20, %v27
    %v30 = vsub.f32 %v21, %v27
    %v31 = vmul.f32 %v29, %v29
    %v32 = vmul.f32 %v30, %v30
    %s33 = scalar_lea.vmem %s2, 1
    %v34 = vld [vmem:[%s33] ss:$2 sm:$0x3]
    %v36 = vperm.slane %v34, 0
    %v37 = vperm.slane %v34, 1
    %40 = vset.pattern.permute.xlu0 1
    %41 = vperm.xlu0 %40, %v18
    %v42 = vpop.permute.xlu0 %41
    %v44 = vsub.f32 %v36, %v42
    %v45 = vsub.f32 %v37, %v42
    %v46 = vmul.f32 %v44, %v44
    %v47 = vmul.f32 %v45, %v45
    %v48 = vadd.f32 %v31, %v46
    %v49 = vadd.f32 %v32, %v47
    %v50 = vstv %s16
    %v51 = vmul.f32 %v48, %v50
    %v52 = vmul.f32 %v49, %v50
    %v53 = vmul.f32 %v51, 1.442695
    %v54 = vpow.pop %v53
    %v55 = vmul.f32 %v52, 1.442695
    %v56 = vpow.pop %v55
    %57 = vst [vmem:[#allocation3] sm:$0xff] %v54
    %58 = vst [vmem:[#allocation3 + $0x8] sm:$0xff] %v56
    %v59 = vld [vmem:[#allocation3] sm:$0xff]
    %v60 = vld [vmem:[#allocation3 + $0x8] sm:$0xff]
    %v61 = vadd.f32 %v59, %v60
    %62 = vadd.xlane.f32.xlu0 %v61
    %v63 = vpop.xlane.xlu0 %62
    %v64 = vrcp.pop %v63
    %v65 = vmul.f32 %v63, %v64
    %v66 = vsub.f32 1.0, %v65
    %v67 = vmul.f32 %v64, %v66
    %v68 = vadd.f32 %v64, %v67
    %vm69 = vweird.f32 %v63
    %vm70 = vweird.f32 %v64
    %vm71 = vmor %vm69, %vm70
    %v72 = vsel %vm71, %v64, %v68
    %v73 = vand.u32 2147483647, %v63
    %vm74 = vcmp.eq.f32.partialorder %v73, 8.507059e+37
    %v75 = vand.u32 %v63, 2147483648
    %v76 = vor.u32 1.1754944e-38, %v75
    %v77 = vsel %vm74, %v76, %v72
    %v78 = vmul.f32 1.0, %v77
    %v79 = vmul.f32 %v59, %v78
    %v80 = vmul.f32 %v60, %v78
    %81 = vst [vmem:[#allocation3] sm:$0xff] %v79
    %82 = vst [vmem:[#allocation3 + $0x8] sm:$0xff] %v80
    // Predicated region
    $region14: #{_radial_basis_pallas.1} parent=1 // pred_check
      _
    $region15: #{_radial_basis_pallas.1} parent=1 // pred_check_branch
      %84 = sbr.rel (0) target = $region17
    $region16: #{_radial_basis_pallas.1} parent=1 // pred_region
      %86 = vsyncadd [#allocation4], 0
      %s88 = sshll.u32 [#allocation3], 4
      %s89 = int_to_ptr.vmem [resolvable:$true] %s88
      %s90 = sshll.u32 %s3, 4
      %s91 = int_to_ptr.hbm [resolvable:$true] %s90
      %93 = dma.vmem_to_hbm [thread:$0]  %s89, 256, %s91, [#allocation4]
    $region17: #{_radial_basis_pallas.1} parent=1 // pred_fallthru
      _
    // Predicated region
    $region18: #{_radial_basis_pallas.1} parent=1 // pred_check
      _
    $region19: #{_radial_basis_pallas.1} parent=1 // pred_check_branch
      %95 = sbr.rel (0) target = $region21
    $region20: #{_radial_basis_pallas.1} parent=1 // pred_region
      %97 = dma.done [#allocation4], 256
    $region21: #{_radial_basis_pallas.1} parent=1 // pred_fallthru
      _
    %98 = vsyncpa [#allocation4], 1

</llo_original>
